<compile_context>
chip_gen: v7x
topology: tpu7x:2x2x1
jax: 0.10.0
libtpu: 0.0.40
codegen_flags: <defaults>
</compile_context>

<pallas_src>
import jax
import jax.numpy as jnp
from jax.experimental import pallas as pl
from jax.experimental.pallas import tpu as pltpu


def _nugget_cheaplab_kernel(x_ref,
                            w0_ref, b0_ref,
                            wnd_ref, bnd_ref,
                            wc1_ref, bc1_ref,
                            wc2_ref, bc2_ref,
                            wc3_ref, bc3_ref,
                            wf_ref, bf_ref,
                            o_ref,
                            cat_ref):
    f32 = jnp.float32
    x = x_ref[0]                                                    # (Cin, T)

    # --- head Nugget: Conv2d(Cin->10, k=1) (+ folded BatchNorm2d(10)) + ReLU
    h0 = jnp.dot(w0_ref[...], x, preferred_element_type=f32) + b0_ref[...]
    h0 = jnp.maximum(h0, 0.0)                                       # (10, T)

    # --- CheapLab LearnedIndices: conv1 folded into merged num/den conv at
    #     init (wnd_eff = [qs*Wn; Wd] @ W1), quotient-BN scale + eps folded in.
    nd = jnp.dot(wnd_ref[...], h0, preferred_element_type=f32) + bnd_ref[...]
    ind = nd[:32, :] * pl.reciprocal(nd[32:, :], approx=False)      # (32, T)
    # TODO(synk): approx=True (+ Newton step) would route the reciprocal
    #             through the EUP slot; kept exact for the 1e-4 parity check.

    # --- classifier Nugget 1 on concat([indices, h0]); stage both into one
    #     lane-dense (48, T) scratch (8-aligned row offsets 0 and 32) so a
    #     single (16,42) dot replaces the former two dots. Quotient-BN shift
    #     is folded into bc1 at init.
    cat_ref[0:32, :] = ind
    cat_ref[32:42, :] = h0
    h1 = jnp.maximum(
        jnp.dot(wc1_ref[...], cat_ref[0:42, :], preferred_element_type=f32)
        + bc1_ref[...], 0.0)                                        # (16, T)
    h2 = jnp.maximum(jnp.dot(wc2_ref[...], h1, preferred_element_type=f32)
                     + bc2_ref[...], 0.0)                           # (8, T)
    h3 = jnp.maximum(jnp.dot(wc3_ref[...], h2, preferred_element_type=f32)
                     + bc3_ref[...], 0.0)                           # (4, T)
    o_ref[0] = jnp.dot(wf_ref[...], h3, preferred_element_type=f32) + bf_ref[...]


_PARAM_ORDER = ("w0", "b0", "wnd", "bnd", "wc1", "bc1",
                "wc2", "bc2", "wc3", "bc3", "wf", "bf")


def _choose_tile(HW, N, max_tile_hw):
    """Pick a pixel-tile size. Prefer a multiple of 128 that divides HW exactly
    (no host-side pad / slice HBM passes) and gives >= 4 grid steps so both
    v7x TensorCores get work; fall back to the padded path otherwise."""
    if HW % 128 == 0:
        divs = [t for t in range(128, min(HW, max_tile_hw) + 1, 128)
                if HW % t == 0]
        for t in sorted(divs, reverse=True):
            if N * (HW // t) >= 4:
                return t, False
        if divs:
            return divs[0], False
    return min(((HW + 127) // 128) * 128, max_tile_hw), True


def nugget_forward(x_nchw, params, *, tile_hw=None, max_tile_hw=8192):
    """Fused Nugget+CheapLab forward. x_nchw: (N, C, H, W) f32 -> (N, out_c, H, W)."""
    N, C, H, W = x_nchw.shape
    HW = H * W
    if tile_hw is None:
        tile_hw, _ = _choose_tile(HW, N, max_tile_hw)
    HW_pad = ((HW + tile_hw - 1) // tile_hw) * tile_hw

    x3 = x_nchw.reshape(N, C, HW).astype(jnp.float32)        # free reshape, no transpose
    if HW_pad != HW:
        # TODO(synk): ragged tail via zero-pad; padded lanes run the full math
        # (safe only because the synthetic denominator bias is >= ~0.5) and
        # are sliced off below. Real weights would need a denominator guard.
        x3 = jnp.pad(x3, ((0, 0), (0, 0), (0, HW_pad - HW)))

    out_c = params["wf"].shape[0]
    plist = [params[k] for k in _PARAM_ORDER]

    def full_spec(a):
        # whole (small) parameter array resident every grid step (all 2-D);
        # constant index map -> Pallas skips re-DMA across steps.
        return pl.BlockSpec(a.shape, lambda n, j: (0, 0))

    out3 = pl.pallas_call(
        _nugget_cheaplab_kernel,
        out_shape=jax.ShapeDtypeStruct((N, out_c, HW_pad), jnp.float32),
        grid_spec=pltpu.PrefetchScalarGridSpec(
            num_scalar_prefetch=0,
            grid=(N, HW_pad // tile_hw),
            in_specs=[pl.BlockSpec((1, C, tile_hw), lambda n, j: (n, 0, j))]
                     + [full_spec(a) for a in plist],
            out_specs=pl.BlockSpec((1, out_c, tile_hw), lambda n, j: (n, 0, j)),
            scratch_shapes=[pltpu.VMEM((48, tile_hw), jnp.float32)]),
        compiler_params=pltpu.CompilerParams(
            dimension_semantics=("parallel", "parallel")),
    )(x3, *plist)

    if HW_pad != HW:
        out3 = out3[:, :, :HW]
    return out3.reshape(N, out_c, H, W)


def _fold_bn_rows(W, b, gamma, beta, mean, var, eps=1e-5):
    """Fold eval-mode BatchNorm into a (Cout, Cin)-oriented 1x1 conv weight."""
    s = gamma / jnp.sqrt(var + eps)
    return W * s[:, None], (b - mean) * s + beta


def init_params(key, c_in=4, out_channels=2):
    keys = jax.random.split(key, 16)
    eps = 1e-5

    def nrm(k, shape, scale):
        return scale * jax.random.normal(k, shape, jnp.float32)

    def fresh_bn(c):  # gamma, beta, running_mean, running_var of a fresh BatchNorm2d
        return (jnp.ones((c,), jnp.float32), jnp.zeros((c,), jnp.float32),
                jnp.zeros((c,), jnp.float32), jnp.ones((c,), jnp.float32))

    p = {}
    # head Nugget: Conv2d(c_in, 10, k=1) + BatchNorm2d(10), folded
    W0 = nrm(keys[0], (10, c_in), 0.3)
    b0 = nrm(keys[1], (10,), 0.1)
    W0, b0 = _fold_bn_rows(W0, b0, *fresh_bn(10), eps=eps)
    p["w0"], p["b0"] = W0, b0[:, None]

    # CheapLab LearnedIndices: conv1 (10->64, bias=False), num/den convs
    # (64->32 each), quotient BatchNorm (eval mode). No nonlinearity between
    # conv1 and num/den, so fold conv1 algebraically: wnd_eff = [qs*Wn; Wd]@W1.
    W1 = nrm(keys[2], (64, 10), 0.2)
    Wn = nrm(keys[3], (32, 64), 0.05)          # numerator conv (bias=False)
    Wd = nrm(keys[4], (32, 64), 0.05)          # denominator conv
    bd = 0.5 + jax.random.uniform(keys[5], (32,), jnp.float32)  # keep den away from 0
    g, beta, mu, var = fresh_bn(32)
    qs = g / jnp.sqrt(var + eps)
    qh = beta - mu * qs
    # ind = qs*num/(den+1e-7) + qh  ->  num' = qs*num ; den' = den + 1e-7 ; qh -> bc1
    p["wnd"] = jnp.concatenate([Wn * qs[:, None], Wd], axis=0) @ W1          # (64, 10)
    p["bnd"] = jnp.concatenate([jnp.zeros((32,), jnp.float32), bd + 1e-7])[:, None]

    # classifier: Nugget(42->16), Nugget(16->8), Nugget(8->4), Conv2d(4->out_c)
    Wc1 = nrm(keys[6], (16, 32 + 10), 0.15)
    bc1 = nrm(keys[7], (16,), 0.05)
    Wc1, bc1 = _fold_bn_rows(Wc1, bc1, *fresh_bn(16), eps=eps)
    bc1 = bc1 + Wc1[:, :32] @ qh               # fold quotient-BN shift
    p["wc1"], p["bc1"] = Wc1, bc1[:, None]

    Wc2, bc2 = _fold_bn_rows(nrm(keys[8], (8, 16), 0.2), nrm(keys[9], (8,), 0.05),
                             *fresh_bn(8), eps=eps)
    p["wc2"], p["bc2"] = Wc2, bc2[:, None]

    Wc3, bc3 = _fold_bn_rows(nrm(keys[10], (4, 8), 0.25), nrm(keys[11], (4,), 0.05),
                             *fresh_bn(4), eps=eps)
    p["wc3"], p["bc3"] = Wc3, bc3[:, None]

    p["wf"] = nrm(keys[12], (out_channels, 4), 0.3)
    p["bf"] = nrm(keys[13], (out_channels,), 0.05)[:, None]
    return p


def reference_forward(x_nchw, params):
    """Plain-JAX reference of the same fused math (for correctness check)."""
    N, C, H, W = x_nchw.shape
    x = x_nchw.reshape(N, C, H * W).astype(jnp.float32)             # (N, C, P)

    def mm(w, a):
        return jnp.einsum("oc,ncp->nop", w, a)

    h0 = jnp.maximum(mm(params["w0"], x) + params["b0"], 0.0)
    nd = mm(params["wnd"], h0) + params["bnd"]
    ind = nd[:, :32] / nd[:, 32:]
    cat = jnp.concatenate([ind, h0], axis=1)                        # (N, 42, P)
    h1 = jnp.maximum(mm(params["wc1"], cat) + params["bc1"], 0.0)
    h2 = jnp.maximum(mm(params["wc2"], h1) + params["bc2"], 0.0)
    h3 = jnp.maximum(mm(params["wc3"], h2) + params["bc3"], 0.0)
    out = mm(params["wf"], h3) + params["bf"]
    return out.reshape(N, -1, H, W)


if __name__ == "__main__":
    key = jax.random.PRNGKey(0)
    kx, kp = jax.random.split(key)
    x = jax.random.normal(kx, (2, 4, 16, 16), jnp.float32)   # NCHW, like torch
    params = init_params(kp, c_in=4, out_channels=2)

    out = jax.block_until_ready(nugget_forward(x, params))
    ref = jax.block_until_ready(reference_forward(x, params))

    assert out.shape == (2, 2, 16, 16), out.shape
    assert bool(jnp.allclose(out, ref, rtol=1e-4, atol=1e-4)), \
        float(jnp.max(jnp.abs(out - ref)))
    print("KERNEL_OK")
</pallas_src>

<mosaic_0001>
module attributes {stable_mosaic.version = 11 : i64} {
  func.func @_nugget_cheaplab_kernel(%arg0: i32, %arg1: i32, %arg2: memref<1x4x128xf32, #tpu.memory_space<vmem>>, %arg3: memref<10x4xf32, #tpu.memory_space<vmem>>, %arg4: memref<10x1xf32, #tpu.memory_space<vmem>>, %arg5: memref<64x10xf32, #tpu.memory_space<vmem>>, %arg6: memref<64x1xf32, #tpu.memory_space<vmem>>, %arg7: memref<16x42xf32, #tpu.memory_space<vmem>>, %arg8: memref<16x1xf32, #tpu.memory_space<vmem>>, %arg9: memref<8x16xf32, #tpu.memory_space<vmem>>, %arg10: memref<8x1xf32, #tpu.memory_space<vmem>>, %arg11: memref<4x8xf32, #tpu.memory_space<vmem>>, %arg12: memref<4x1xf32, #tpu.memory_space<vmem>>, %arg13: memref<2x4xf32, #tpu.memory_space<vmem>>, %arg14: memref<2x1xf32, #tpu.memory_space<vmem>>, %arg15: memref<1x2x128xf32, #tpu.memory_space<vmem>>, %arg16: memref<48x128xf32, #tpu.memory_space<vmem>>) attributes {dimension_semantics = [#tpu.dimension_semantics<parallel>, #tpu.dimension_semantics<parallel>], iteration_bounds = array<i64: 2, 2>, scalar_prefetch = 0 : i64, scratch_operands = 1 : i64, tpu.core_type = #tpu.core_type<tc>, window_params = [{transform_indices = @transform_0, window_bounds = array<i64: 1, 4, 128>}, {pipeline_mode = #tpu.pipeline_mode<synchronous>, transform_indices = @transform_1, window_bounds = array<i64: 10, 4>}, {pipeline_mode = #tpu.pipeline_mode<synchronous>, transform_indices = @transform_2, window_bounds = array<i64: 10, 1>}, {pipeline_mode = #tpu.pipeline_mode<synchronous>, transform_indices = @transform_3, window_bounds = array<i64: 64, 10>}, {pipeline_mode = #tpu.pipeline_mode<synchronous>, transform_indices = @transform_4, window_bounds = array<i64: 64, 1>}, {pipeline_mode = #tpu.pipeline_mode<synchronous>, transform_indices = @transform_5, window_bounds = array<i64: 16, 42>}, {pipeline_mode = #tpu.pipeline_mode<synchronous>, transform_indices = @transform_6, window_bounds = array<i64: 16, 1>}, {pipeline_mode = #tpu.pipeline_mode<synchronous>, transform_indices = @transform_7, window_bounds = array<i64: 8, 16>}, {pipeline_mode = #tpu.pipeline_mode<synchronous>, transform_indices = @transform_8, window_bounds = array<i64: 8, 1>}, {pipeline_mode = #tpu.pipeline_mode<synchronous>, transform_indices = @transform_9, window_bounds = array<i64: 4, 8>}, {pipeline_mode = #tpu.pipeline_mode<synchronous>, transform_indices = @transform_10, window_bounds = array<i64: 4, 1>}, {pipeline_mode = #tpu.pipeline_mode<synchronous>, transform_indices = @transform_11, window_bounds = array<i64: 2, 4>}, {pipeline_mode = #tpu.pipeline_mode<synchronous>, transform_indices = @transform_12, window_bounds = array<i64: 2, 1>}, {transform_indices = @transform_13, window_bounds = array<i64: 1, 2, 128>}]} {
    %c0 = arith.constant 0 : index
    %c0_0 = arith.constant 0 : index
    %c0_1 = arith.constant 0 : index
    %0 = vector.load %arg2[%c0, %c0_0, %c0_1] : memref<1x4x128xf32, #tpu.memory_space<vmem>>, vector<1x4x128xf32>
    %1 = vector.shape_cast %0 : vector<1x4x128xf32> to vector<4x128xf32>
    %c0_2 = arith.constant 0 : index
    %c0_3 = arith.constant 0 : index
    %2 = vector.load %arg3[%c0_2, %c0_3] : memref<10x4xf32, #tpu.memory_space<vmem>>, vector<10x4xf32>
    %cst = arith.constant dense<0.000000e+00> : vector<10x128xf32>
    %3 = tpu.matmul %2, %1, %cst {dimension_numbers = #tpu.dot_dimension_numbers<[1], [0], [0], [1], [0, 0, 1, 1], [], []>} : vector<10x4xf32>, vector<4x128xf32>, vector<10x128xf32> -> vector<10x128xf32>
    %c0_4 = arith.constant 0 : index
    %c0_5 = arith.constant 0 : index
    %4 = vector.load %arg4[%c0_4, %c0_5] : memref<10x1xf32, #tpu.memory_space<vmem>>, vector<10x1xf32>
    %5 = vector.broadcast %4 : vector<10x1xf32> to vector<10x128xf32>
    %6 = arith.addf %3, %5 : vector<10x128xf32>
    %cst_6 = arith.constant 0.000000e+00 : f32
    %7 = vector.broadcast %cst_6 : f32 to vector<10x128xf32>
    %8 = arith.maximumf %6, %7 : vector<10x128xf32>
    %c0_7 = arith.constant 0 : index
    %c0_8 = arith.constant 0 : index
    %9 = vector.load %arg5[%c0_7, %c0_8] : memref<64x10xf32, #tpu.memory_space<vmem>>, vector<64x10xf32>
    %cst_9 = arith.constant dense<0.000000e+00> : vector<64x128xf32>
    %10 = tpu.matmul %9, %8, %cst_9 {dimension_numbers = #tpu.dot_dimension_numbers<[1], [0], [0], [1], [0, 0, 1, 1], [], []>} : vector<64x10xf32>, vector<10x128xf32>, vector<64x128xf32> -> vector<64x128xf32>
    %c0_10 = arith.constant 0 : index
    %c0_11 = arith.constant 0 : index
    %11 = vector.load %arg6[%c0_10, %c0_11] : memref<64x1xf32, #tpu.memory_space<vmem>>, vector<64x1xf32>
    %12 = vector.broadcast %11 : vector<64x1xf32> to vector<64x128xf32>
    %13 = arith.addf %10, %12 : vector<64x128xf32>
    %14 = vector.extract_strided_slice %13 {offsets = [0, 0], sizes = [32, 128], strides = [1, 1]} : vector<64x128xf32> to vector<32x128xf32>
    %15 = vector.extract_strided_slice %13 {offsets = [32, 0], sizes = [32, 128], strides = [1, 1]} : vector<64x128xf32> to vector<32x128xf32>
    %16 = tpu.reciprocal %15 : vector<32x128xf32> -> vector<32x128xf32>
    %17 = arith.mulf %14, %16 : vector<32x128xf32>
    %c0_12 = arith.constant 0 : index
    %c0_13 = arith.constant 0 : index
    %18 = vector.load %arg16[%c0_12, %c0_13] : memref<48x128xf32, #tpu.memory_space<vmem>>, vector<32x128xf32>
    tpu.vector_store %arg16[%c0_12, %c0_13], %17 {strides = array<i32>} : memref<48x128xf32, #tpu.memory_space<vmem>>, vector<32x128xf32>,
    %c32 = arith.constant 32 : index
    %c0_14 = arith.constant 0 : index
    %19 = vector.load %arg16[%c32, %c0_14] : memref<48x128xf32, #tpu.memory_space<vmem>>, vector<10x128xf32>
    tpu.vector_store %arg16[%c32, %c0_14], %8 {strides = array<i32>} : memref<48x128xf32, #tpu.memory_space<vmem>>, vector<10x128xf32>,
    %c0_15 = arith.constant 0 : index
    %c0_16 = arith.constant 0 : index
    %20 = vector.load %arg7[%c0_15, %c0_16] : memref<16x42xf32, #tpu.memory_space<vmem>>, vector<16x42xf32>
    %c0_17 = arith.constant 0 : index
    %c0_18 = arith.constant 0 : index
    %21 = vector.load %arg16[%c0_17, %c0_18] : memref<48x128xf32, #tpu.memory_space<vmem>>, vector<42x128xf32>
    %cst_19 = arith.constant dense<0.000000e+00> : vector<16x128xf32>
    %22 = tpu.matmul %20, %21, %cst_19 {dimension_numbers = #tpu.dot_dimension_numbers<[1], [0], [0], [1], [0, 0, 1, 1], [], []>} : vector<16x42xf32>, vector<42x128xf32>, vector<16x128xf32> -> vector<16x128xf32>
    %c0_20 = arith.constant 0 : index
    %c0_21 = arith.constant 0 : index
    %23 = vector.load %arg8[%c0_20, %c0_21] : memref<16x1xf32, #tpu.memory_space<vmem>>, vector<16x1xf32>
    %24 = vector.broadcast %23 : vector<16x1xf32> to vector<16x128xf32>
    %25 = arith.addf %22, %24 : vector<16x128xf32>
    %cst_22 = arith.constant 0.000000e+00 : f32
    %26 = vector.broadcast %cst_22 : f32 to vector<16x128xf32>
    %27 = arith.maximumf %25, %26 : vector<16x128xf32>
    %c0_23 = arith.constant 0 : index
    %c0_24 = arith.constant 0 : index
    %28 = vector.load %arg9[%c0_23, %c0_24] : memref<8x16xf32, #tpu.memory_space<vmem>>, vector<8x16xf32>
    %cst_25 = arith.constant dense<0.000000e+00> : vector<8x128xf32>
    %29 = tpu.matmul %28, %27, %cst_25 {dimension_numbers = #tpu.dot_dimension_numbers<[1], [0], [0], [1], [0, 0, 1, 1], [], []>} : vector<8x16xf32>, vector<16x128xf32>, vector<8x128xf32> -> vector<8x128xf32>
    %c0_26 = arith.constant 0 : index
    %c0_27 = arith.constant 0 : index
    %30 = vector.load %arg10[%c0_26, %c0_27] : memref<8x1xf32, #tpu.memory_space<vmem>>, vector<8x1xf32>
    %31 = vector.broadcast %30 : vector<8x1xf32> to vector<8x128xf32>
    %32 = arith.addf %29, %31 : vector<8x128xf32>
    %cst_28 = arith.constant 0.000000e+00 : f32
    %33 = vector.broadcast %cst_28 : f32 to vector<8x128xf32>
    %34 = arith.maximumf %32, %33 : vector<8x128xf32>
    %c0_29 = arith.constant 0 : index
    %c0_30 = arith.constant 0 : index
    %35 = vector.load %arg11[%c0_29, %c0_30] : memref<4x8xf32, #tpu.memory_space<vmem>>, vector<4x8xf32>
    %cst_31 = arith.constant dense<0.000000e+00> : vector<4x128xf32>
    %36 = tpu.matmul %35, %34, %cst_31 {dimension_numbers = #tpu.dot_dimension_numbers<[1], [0], [0], [1], [0, 0, 1, 1], [], []>} : vector<4x8xf32>, vector<8x128xf32>, vector<4x128xf32> -> vector<4x128xf32>
    %c0_32 = arith.constant 0 : index
    %c0_33 = arith.constant 0 : index
    %37 = vector.load %arg12[%c0_32, %c0_33] : memref<4x1xf32, #tpu.memory_space<vmem>>, vector<4x1xf32>
    %38 = vector.broadcast %37 : vector<4x1xf32> to vector<4x128xf32>
    %39 = arith.addf %36, %38 : vector<4x128xf32>
    %cst_34 = arith.constant 0.000000e+00 : f32
    %40 = vector.broadcast %cst_34 : f32 to vector<4x128xf32>
    %41 = arith.maximumf %39, %40 : vector<4x128xf32>
    %c0_35 = arith.constant 0 : index
    %c0_36 = arith.constant 0 : index
    %42 = vector.load %arg13[%c0_35, %c0_36] : memref<2x4xf32, #tpu.memory_space<vmem>>, vector<2x4xf32>
    %cst_37 = arith.constant dense<0.000000e+00> : vector<2x128xf32>
    %43 = tpu.matmul %42, %41, %cst_37 {dimension_numbers = #tpu.dot_dimension_numbers<[1], [0], [0], [1], [0, 0, 1, 1], [], []>} : vector<2x4xf32>, vector<4x128xf32>, vector<2x128xf32> -> vector<2x128xf32>
    %c0_38 = arith.constant 0 : index
    %c0_39 = arith.constant 0 : index
    %44 = vector.load %arg14[%c0_38, %c0_39] : memref<2x1xf32, #tpu.memory_space<vmem>>, vector<2x1xf32>
    %45 = vector.broadcast %44 : vector<2x1xf32> to vector<2x128xf32>
    %46 = arith.addf %43, %45 : vector<2x128xf32>
    %c0_40 = arith.constant 0 : index
    %c0_41 = arith.constant 0 : index
    %c0_42 = arith.constant 0 : index
    %47 = vector.load %arg15[%c0_40, %c0_41, %c0_42] : memref<1x2x128xf32, #tpu.memory_space<vmem>>, vector<1x2x128xf32>
    %48 = vector.shape_cast %47 : vector<1x2x128xf32> to vector<2x128xf32>
    %49 = vector.shape_cast %46 : vector<2x128xf32> to vector<1x2x128xf32>
    tpu.vector_store %arg15[%c0_40, %c0_41, %c0_42], %49 {strides = array<i32>} : memref<1x2x128xf32, #tpu.memory_space<vmem>>, vector<1x2x128xf32>,
    return
  }
  func.func @transform_0(%arg0: i32, %arg1: i32) -> (i32, i32, i32) {
    %c0_i32 = arith.constant 0 : i32
    %c0_i32_0 = arith.constant 0 : i32
    return %arg0, %c0_i32, %arg1 : i32, i32, i32
  }
  func.func @transform_1(%arg0: i32, %arg1: i32) -> (i32, i32) {
    %c0_i32 = arith.constant 0 : i32
    %c0_i32_0 = arith.constant 0 : i32
    %c0_i32_1 = arith.constant 0 : i32
    return %c0_i32, %c0_i32_0 : i32, i32
  }
  func.func @transform_2(%arg0: i32, %arg1: i32) -> (i32, i32) {
    %c0_i32 = arith.constant 0 : i32
    %c0_i32_0 = arith.constant 0 : i32
    %c0_i32_1 = arith.constant 0 : i32
    return %c0_i32, %c0_i32_0 : i32, i32
  }
  func.func @transform_3(%arg0: i32, %arg1: i32) -> (i32, i32) {
    %c0_i32 = arith.constant 0 : i32
    %c0_i32_0 = arith.constant 0 : i32
    %c0_i32_1 = arith.constant 0 : i32
    return %c0_i32, %c0_i32_0 : i32, i32
  }
  func.func @transform_4(%arg0: i32, %arg1: i32) -> (i32, i32) {
    %c0_i32 = arith.constant 0 : i32
    %c0_i32_0 = arith.constant 0 : i32
    %c0_i32_1 = arith.constant 0 : i32
    return %c0_i32, %c0_i32_0 : i32, i32
  }
  func.func @transform_5(%arg0: i32, %arg1: i32) -> (i32, i32) {
    %c0_i32 = arith.constant 0 : i32
    %c0_i32_0 = arith.constant 0 : i32
    %c0_i32_1 = arith.constant 0 : i32
    return %c0_i32, %c0_i32_0 : i32, i32
  }
  func.func @transform_6(%arg0: i32, %arg1: i32) -> (i32, i32) {
    %c0_i32 = arith.constant 0 : i32
    %c0_i32_0 = arith.constant 0 : i32
    %c0_i32_1 = arith.constant 0 : i32
    return %c0_i32, %c0_i32_0 : i32, i32
  }
  func.func @transform_7(%arg0: i32, %arg1: i32) -> (i32, i32) {
    %c0_i32 = arith.constant 0 : i32
    %c0_i32_0 = arith.constant 0 : i32
    %c0_i32_1 = arith.constant 0 : i32
    return %c0_i32, %c0_i32_0 : i32, i32
  }
  func.func @transform_8(%arg0: i32, %arg1: i32) -> (i32, i32) {
    %c0_i32 = arith.constant 0 : i32
    %c0_i32_0 = arith.constant 0 : i32
    %c0_i32_1 = arith.constant 0 : i32
    return %c0_i32, %c0_i32_0 : i32, i32
  }
  func.func @transform_9(%arg0: i32, %arg1: i32) -> (i32, i32) {
    %c0_i32 = arith.constant 0 : i32
    %c0_i32_0 = arith.constant 0 : i32
    %c0_i32_1 = arith.constant 0 : i32
    return %c0_i32, %c0_i32_0 : i32, i32
  }
  func.func @transform_10(%arg0: i32, %arg1: i32) -> (i32, i32) {
    %c0_i32 = arith.constant 0 : i32
    %c0_i32_0 = arith.constant 0 : i32
    %c0_i32_1 = arith.constant 0 : i32
    return %c0_i32, %c0_i32_0 : i32, i32
  }
  func.func @transform_11(%arg0: i32, %arg1: i32) -> (i32, i32) {
    %c0_i32 = arith.constant 0 : i32
    %c0_i32_0 = arith.constant 0 : i32
    %c0_i32_1 = arith.constant 0 : i32
    return %c0_i32, %c0_i32_0 : i32, i32
  }
  func.func @transform_12(%arg0: i32, %arg1: i32) -> (i32, i32) {
    %c0_i32 = arith.constant 0 : i32
    %c0_i32_0 = arith.constant 0 : i32
    %c0_i32_1 = arith.constant 0 : i32
    return %c0_i32, %c0_i32_0 : i32, i32
  }
  func.func @transform_13(%arg0: i32, %arg1: i32) -> (i32, i32, i32) {
    %c0_i32 = arith.constant 0 : i32
    %c0_i32_0 = arith.constant 0 : i32
    return %arg0, %c0_i32, %arg1 : i32, i32, i32
  }
}

</mosaic_0001>

<llo_original>
// kernel: tpu_custom_call.1
$region0: #{tpu_custom_call.1}
  #allocation0 [shape = 'u32[]', space=smem, size = 0x4, offset = 0x4, fixed_abs, tag = 'smem constant byte address 0x4 - core index']
  #allocation1 [shape = 'u32[144,128]{1,0:T(1,128)}', space=vmem, size = 0x12000, scoped, tag = 'internal scratch']
  #allocation2 [shape = 'f32[48,128]{1,0:T(8,128)}', space=vmem, size = 0x6000, scoped, tag = 'scratch operand']
  %s0 = inlined_call_operand.vmem [shape: f32[2,4,256], index: 0, kind: input, shape index: {}]
  %s1 = inlined_call_operand.vmem [shape: f32[10,4], index: 1, kind: input, shape index: {}]
  %s2 = inlined_call_operand.vmem [shape: f32[10,1], index: 2, kind: input, shape index: {}]
  %s3 = inlined_call_operand.vmem [shape: f32[64,10], index: 3, kind: input, shape index: {}]
  %s4 = inlined_call_operand.vmem [shape: f32[64,1], index: 4, kind: input, shape index: {}]
  %s5 = inlined_call_operand.vmem [shape: f32[16,42], index: 5, kind: input, shape index: {}]
  %s6 = inlined_call_operand.vmem [shape: f32[16,1], index: 6, kind: input, shape index: {}]
  %s7 = inlined_call_operand.vmem [shape: f32[8,16], index: 7, kind: input, shape index: {}]
  %s8 = inlined_call_operand.vmem [shape: f32[8,1], index: 8, kind: input, shape index: {}]
  %s9 = inlined_call_operand.vmem [shape: f32[4,8], index: 9, kind: input, shape index: {}]
  %s10 = inlined_call_operand.vmem [shape: f32[4,1], index: 10, kind: input, shape index: {}]
  %s11 = inlined_call_operand.vmem [shape: f32[2,4], index: 11, kind: input, shape index: {}]
  %s12 = inlined_call_operand.vmem [shape: f32[2,1], index: 12, kind: input, shape index: {}]
  %s13 = inlined_call_operand.hbm [shape: f32[2,2,256], index: 13, kind: output, shape index: {}]
  %s14 = sld [smem:[#allocation0]]
  $region85: #{tpu_custom_call.1} parent=0
    _
  %s16 = ssub.s32 1, %s14
  %s17 = scalar_select 0, %s16, %s14
  $region1: #{tpu_custom_call.1} parent=0
    #allocation3 [shape = 'u8[2048]{0}', space=vmem, size = 0x800, scoped, tag = 'output window, operand 0']
    #allocation4 [shape = 's32[2]{0}', space=sflag, size = 0x8, scoped, tag = 'scoped memory for tpu_custom_call.1']
    %18 = vsyncpa [#allocation4], 0
    %s19 = scalar_lea.sflag [#allocation4], 1
    %20 = vsyncpa %s19, 0
    loop: start=0, step=1, limit=6
    $region2: #{tpu_custom_call.1} parent=1 // loop_pre_header
      _
    $region3: #{tpu_custom_call.1} parent=1 // loop_header
      %s22 = sphi 0, %s26
      %p23 = scmp.ge.s32.totalorder %s22, 6
      %s29 = sphi 0, %s41
      %s30 = sphi 0, %s37
      %s31 = sphi 0, %s29
      %s32 = sphi 0, %s30
      %s33 = sphi 0, %s31
      %s34 = sphi 0, %s32
      %s46 = sphi 0, %s48
      %s49 = sphi 0, %s46
      %s50 = sphi 0, %s49
      %s66 = sphi 0, %s50
      %s70 = sphi 0, %s70
      %s72 = sphi 0, %s70
      %s73 = sphi 0, %s72
      %s87 = sphi 0, %s73
      %s91 = sphi 0, %s91
      %s93 = sphi 0, %s91
      %s94 = sphi 0, %s93
      %s108 = sphi 0, %s94
      %s112 = sphi 0, %s112
      %s114 = sphi 0, %s112
      %s115 = sphi 0, %s114
      %s129 = sphi 0, %s115
      %s133 = sphi 0, %s133
      %s135 = sphi 0, %s133
      %s136 = sphi 0, %s135
      %s150 = sphi 0, %s136
      %s154 = sphi 0, %s154
      %s156 = sphi 0, %s154
      %s157 = sphi 0, %s156
      %s171 = sphi 0, %s157
      %s175 = sphi 0, %s175
      %s177 = sphi 0, %s175
      %s178 = sphi 0, %s177
      %s192 = sphi 0, %s178
      %s196 = sphi 0, %s196
      %s198 = sphi 0, %s196
      %s199 = sphi 0, %s198
      %s213 = sphi 0, %s199
      %s217 = sphi 0, %s217
      %s219 = sphi 0, %s217
      %s220 = sphi 0, %s219
      %s234 = sphi 0, %s220
      %s238 = sphi 0, %s238
      %s240 = sphi 0, %s238
      %s241 = sphi 0, %s240
      %s255 = sphi 0, %s241
      %s259 = sphi 0, %s259
      %s261 = sphi 0, %s259
      %s262 = sphi 0, %s261
      %s276 = sphi 0, %s262
      %s280 = sphi 0, %s280
      %s282 = sphi 0, %s280
      %s283 = sphi 0, %s282
      %s297 = sphi 0, %s283
      %s301 = sphi 0, %s301
      %s303 = sphi 0, %s301
      %s304 = sphi 0, %s303
      %s318 = sphi 0, %s304
      %s326 = sphi 0, %s328
      %s329 = sphi 0, %s326
      %s330 = sphi 0, %s329
      %s346 = sphi 0, %s330
    $region4: #{tpu_custom_call.1} parent=1 // loop_header_branch
      %25 = sbr.rel (%p23) target = $region8
    $region5: #{tpu_custom_call.1} parent=1 // loop_body
      %s27 = ssub.s32 %s22, 1
      %s28 = ssub.s32 %s22, 2
      %s35 = sadd.s32 1, %s30
      %p36 = scmp.ge.s32.totalorder %s35, 2
      %s37 = scalar_select %p36, 0, %s35
      %s38 = sadd.s32 1, %s29
      %s39 = scalar_select %p36, %s38, %s29
      %p40 = scmp.ge.s32.totalorder %s39, 2
      %s41 = scalar_select %p40, 0, %s39
      %s42 = ssub.s32 %s29, %s41
      %s43 = ssub.s32 %s30, %s37
      %s44 = sor.u32 %s42, %s43
      %p45 = scmp.eq.s32.totalorder %s44, 0
      %s47 = sadd.s32 %s46, 1
      %s48 = scalar_select %p45, %s46, %s47
      %p51 = pneg %p45
      %p52 = scmp.eq.s32.totalorder %s22, 3
      %p53 = por %p51, %p52
      %p54 = scmp.ne.s32.totalorder %s46, %s49
      %p55 = scmp.eq.s32.totalorder %s22, 0
      %p56 = por %p54, %p55
      %p57 = scmp.ne.s32.totalorder %s46, %s49
      %p58 = scmp.eq.s32.totalorder %s27, 3
      %p59 = por %p57, %p58
      %p60 = scmp.ne.s32.totalorder %s49, %s50
      %p61 = scmp.eq.s32.totalorder %s27, 0
      %p62 = por %p60, %p61
      %p63 = scmp.ne.s32.totalorder %s49, %s50
      %p64 = scmp.eq.s32.totalorder %s28, 3
      %p65 = por %p63, %p64
      %p67 = scmp.ne.s32.totalorder %s50, %s66
      %p68 = scmp.eq.s32.totalorder %s28, 0
      %p69 = por %p67, %p68
      %s71 = sadd.s32 %s70, 1
      %p74 = scmp.eq.s32.totalorder %s22, 3
      %p75 = scmp.ne.s32.totalorder %s70, %s72
      %p76 = scmp.eq.s32.totalorder %s22, 0
      %p77 = por %p75, %p76
      %p78 = scmp.ne.s32.totalorder %s70, %s72
      %p79 = scmp.eq.s32.totalorder %s27, 3
      %p80 = por %p78, %p79
      %p81 = scmp.ne.s32.totalorder %s72, %s73
      %p82 = scmp.eq.s32.totalorder %s27, 0
      %p83 = por %p81, %p82
      %p84 = scmp.ne.s32.totalorder %s72, %s73
      %p85 = scmp.eq.s32.totalorder %s28, 3
      %p86 = por %p84, %p85
      %p88 = scmp.ne.s32.totalorder %s73, %s87
      %p89 = scmp.eq.s32.totalorder %s28, 0
      %p90 = por %p88, %p89
      %s92 = sadd.s32 %s91, 1
      %p95 = scmp.eq.s32.totalorder %s22, 3
      %p96 = scmp.ne.s32.totalorder %s91, %s93
      %p97 = scmp.eq.s32.totalorder %s22, 0
      %p98 = por %p96, %p97
      %p99 = scmp.ne.s32.totalorder %s91, %s93
      %p100 = scmp.eq.s32.totalorder %s27, 3
      %p101 = por %p99, %p100
      %p102 = scmp.ne.s32.totalorder %s93, %s94
      %p103 = scmp.eq.s32.totalorder %s27, 0
      %p104 = por %p102, %p103
      %p105 = scmp.ne.s32.totalorder %s93, %s94
      %p106 = scmp.eq.s32.totalorder %s28, 3
      %p107 = por %p105, %p106
      %p109 = scmp.ne.s32.totalorder %s94, %s108
      %p110 = scmp.eq.s32.totalorder %s28, 0
      %p111 = por %p109, %p110
      %s113 = sadd.s32 %s112, 1
      %p116 = scmp.eq.s32.totalorder %s22, 3
      %p117 = scmp.ne.s32.totalorder %s112, %s114
      %p118 = scmp.eq.s32.totalorder %s22, 0
      %p119 = por %p117, %p118
      %p120 = scmp.ne.s32.totalorder %s112, %s114
      %p121 = scmp.eq.s32.totalorder %s27, 3
      %p122 = por %p120, %p121
      %p123 = scmp.ne.s32.totalorder %s114, %s115
      %p124 = scmp.eq.s32.totalorder %s27, 0
      %p125 = por %p123, %p124
      %p126 = scmp.ne.s32.totalorder %s114, %s115
      %p127 = scmp.eq.s32.totalorder %s28, 3
      %p128 = por %p126, %p127
      %p130 = scmp.ne.s32.totalorder %s115, %s129
      %p131 = scmp.eq.s32.totalorder %s28, 0
      %p132 = por %p130, %p131
      %s134 = sadd.s32 %s133, 1
      %p137 = scmp.eq.s32.totalorder %s22, 3
      %p138 = scmp.ne.s32.totalorder %s133, %s135
      %p139 = scmp.eq.s32.totalorder %s22, 0
      %p140 = por %p138, %p139
      %p141 = scmp.ne.s32.totalorder %s133, %s135
      %p142 = scmp.eq.s32.totalorder %s27, 3
      %p143 = por %p141, %p142
      %p144 = scmp.ne.s32.totalorder %s135, %s136
      %p145 = scmp.eq.s32.totalorder %s27, 0
      %p146 = por %p144, %p145
      %p147 = scmp.ne.s32.totalorder %s135, %s136
      %p148 = scmp.eq.s32.totalorder %s28, 3
      %p149 = por %p147, %p148
      %p151 = scmp.ne.s32.totalorder %s136, %s150
      %p152 = scmp.eq.s32.totalorder %s28, 0
      %p153 = por %p151, %p152
      %s155 = sadd.s32 %s154, 1
      %p158 = scmp.eq.s32.totalorder %s22, 3
      %p159 = scmp.ne.s32.totalorder %s154, %s156
      %p160 = scmp.eq.s32.totalorder %s22, 0
      %p161 = por %p159, %p160
      %p162 = scmp.ne.s32.totalorder %s154, %s156
      %p163 = scmp.eq.s32.totalorder %s27, 3
      %p164 = por %p162, %p163
      %p165 = scmp.ne.s32.totalorder %s156, %s157
      %p166 = scmp.eq.s32.totalorder %s27, 0
      %p167 = por %p165, %p166
      %p168 = scmp.ne.s32.totalorder %s156, %s157
      %p169 = scmp.eq.s32.totalorder %s28, 3
      %p170 = por %p168, %p169
      %p172 = scmp.ne.s32.totalorder %s157, %s171
      %p173 = scmp.eq.s32.totalorder %s28, 0
      %p174 = por %p172, %p173
      %s176 = sadd.s32 %s175, 1
      %p179 = scmp.eq.s32.totalorder %s22, 3
      %p180 = scmp.ne.s32.totalorder %s175, %s177
      %p181 = scmp.eq.s32.totalorder %s22, 0
      %p182 = por %p180, %p181
      %p183 = scmp.ne.s32.totalorder %s175, %s177
      %p184 = scmp.eq.s32.totalorder %s27, 3
      %p185 = por %p183, %p184
      %p186 = scmp.ne.s32.totalorder %s177, %s178
      %p187 = scmp.eq.s32.totalorder %s27, 0
      %p188 = por %p186, %p187
      %p189 = scmp.ne.s32.totalorder %s177, %s178
      %p190 = scmp.eq.s32.totalorder %s28, 3
      %p191 = por %p189, %p190
      %p193 = scmp.ne.s32.totalorder %s178, %s192
      %p194 = scmp.eq.s32.totalorder %s28, 0
      %p195 = por %p193, %p194
      %s197 = sadd.s32 %s196, 1
      %p200 = scmp.eq.s32.totalorder %s22, 3
      %p201 = scmp.ne.s32.totalorder %s196, %s198
      %p202 = scmp.eq.s32.totalorder %s22, 0
      %p203 = por %p201, %p202
      %p204 = scmp.ne.s32.totalorder %s196, %s198
      %p205 = scmp.eq.s32.totalorder %s27, 3
      %p206 = por %p204, %p205
      %p207 = scmp.ne.s32.totalorder %s198, %s199
      %p208 = scmp.eq.s32.totalorder %s27, 0
      %p209 = por %p207, %p208
      %p210 = scmp.ne.s32.totalorder %s198, %s199
      %p211 = scmp.eq.s32.totalorder %s28, 3
      %p212 = por %p210, %p211
      %p214 = scmp.ne.s32.totalorder %s199, %s213
      %p215 = scmp.eq.s32.totalorder %s28, 0
      %p216 = por %p214, %p215
      %s218 = sadd.s32 %s217, 1
      %p221 = scmp.eq.s32.totalorder %s22, 3
      %p222 = scmp.ne.s32.totalorder %s217, %s219
      %p223 = scmp.eq.s32.totalorder %s22, 0
      %p224 = por %p222, %p223
      %p225 = scmp.ne.s32.totalorder %s217, %s219
      %p226 = scmp.eq.s32.totalorder %s27, 3
      %p227 = por %p225, %p226
      %p228 = scmp.ne.s32.totalorder %s219, %s220
      %p229 = scmp.eq.s32.totalorder %s27, 0
      %p230 = por %p228, %p229
      %p231 = scmp.ne.s32.totalorder %s219, %s220
      %p232 = scmp.eq.s32.totalorder %s28, 3
      %p233 = por %p231, %p232
      %p235 = scmp.ne.s32.totalorder %s220, %s234
      %p236 = scmp.eq.s32.totalorder %s28, 0
      %p237 = por %p235, %p236
      %s239 = sadd.s32 %s238, 1
      %p242 = scmp.eq.s32.totalorder %s22, 3
      %p243 = scmp.ne.s32.totalorder %s238, %s240
      %p244 = scmp.eq.s32.totalorder %s22, 0
      %p245 = por %p243, %p244
      %p246 = scmp.ne.s32.totalorder %s238, %s240
      %p247 = scmp.eq.s32.totalorder %s27, 3
      %p248 = por %p246, %p247
      %p249 = scmp.ne.s32.totalorder %s240, %s241
      %p250 = scmp.eq.s32.totalorder %s27, 0
      %p251 = por %p249, %p250
      %p252 = scmp.ne.s32.totalorder %s240, %s241
      %p253 = scmp.eq.s32.totalorder %s28, 3
      %p254 = por %p252, %p253
      %p256 = scmp.ne.s32.totalorder %s241, %s255
      %p257 = scmp.eq.s32.totalorder %s28, 0
      %p258 = por %p256, %p257
      %s260 = sadd.s32 %s259, 1
      %p263 = scmp.eq.s32.totalorder %s22, 3
      %p264 = scmp.ne.s32.totalorder %s259, %s261
      %p265 = scmp.eq.s32.totalorder %s22, 0
      %p266 = por %p264, %p265
      %p267 = scmp.ne.s32.totalorder %s259, %s261
      %p268 = scmp.eq.s32.totalorder %s27, 3
      %p269 = por %p267, %p268
      %p270 = scmp.ne.s32.totalorder %s261, %s262
      %p271 = scmp.eq.s32.totalorder %s27, 0
      %p272 = por %p270, %p271
      %p273 = scmp.ne.s32.totalorder %s261, %s262
      %p274 = scmp.eq.s32.totalorder %s28, 3
      %p275 = por %p273, %p274
      %p277 = scmp.ne.s32.totalorder %s262, %s276
      %p278 = scmp.eq.s32.totalorder %s28, 0
      %p279 = por %p277, %p278
      %s281 = sadd.s32 %s280, 1
      %p284 = scmp.eq.s32.totalorder %s22, 3
      %p285 = scmp.ne.s32.totalorder %s280, %s282
      %p286 = scmp.eq.s32.totalorder %s22, 0
      %p287 = por %p285, %p286
      %p288 = scmp.ne.s32.totalorder %s280, %s282
      %p289 = scmp.eq.s32.totalorder %s27, 3
      %p290 = por %p288, %p289
      %p291 = scmp.ne.s32.totalorder %s282, %s283
      %p292 = scmp.eq.s32.totalorder %s27, 0
      %p293 = por %p291, %p292
      %p294 = scmp.ne.s32.totalorder %s282, %s283
      %p295 = scmp.eq.s32.totalorder %s28, 3
      %p296 = por %p294, %p295
      %p298 = scmp.ne.s32.totalorder %s283, %s297
      %p299 = scmp.eq.s32.totalorder %s28, 0
      %p300 = por %p298, %p299
      %s302 = sadd.s32 %s301, 1
      %p305 = scmp.eq.s32.totalorder %s22, 3
      %p306 = scmp.ne.s32.totalorder %s301, %s303
      %p307 = scmp.eq.s32.totalorder %s22, 0
      %p308 = por %p306, %p307
      %p309 = scmp.ne.s32.totalorder %s301, %s303
      %p310 = scmp.eq.s32.totalorder %s27, 3
      %p311 = por %p309, %p310
      %p312 = scmp.ne.s32.totalorder %s303, %s304
      %p313 = scmp.eq.s32.totalorder %s27, 0
      %p314 = por %p312, %p313
      %p315 = scmp.ne.s32.totalorder %s303, %s304
      %p316 = scmp.eq.s32.totalorder %s28, 3
      %p317 = por %p315, %p316
      %p319 = scmp.ne.s32.totalorder %s304, %s318
      %p320 = scmp.eq.s32.totalorder %s28, 0
      %p321 = por %p319, %p320
      %s322 = ssub.s32 %s29, %s41
      %s323 = ssub.s32 %s30, %s37
      %s324 = sor.u32 %s322, %s323
      %p325 = scmp.eq.s32.totalorder %s324, 0
      %s327 = sadd.s32 %s326, 1
      %s328 = scalar_select %p325, %s326, %s327
      %p331 = pneg %p325
      %p332 = scmp.eq.s32.totalorder %s22, 3
      %p333 = por %p331, %p332
      %p334 = scmp.ne.s32.totalorder %s326, %s329
      %p335 = scmp.eq.s32.totalorder %s22, 0
      %p336 = por %p334, %p335
      %p337 = scmp.ne.s32.totalorder %s326, %s329
      %p338 = scmp.eq.s32.totalorder %s27, 3
      %p339 = por %p337, %p338
      %p340 = scmp.ne.s32.totalorder %s329, %s330
      %p341 = scmp.eq.s32.totalorder %s27, 0
      %p342 = por %p340, %p341
      %p343 = scmp.ne.s32.totalorder %s329, %s330
      %p344 = scmp.eq.s32.totalorder %s28, 3
      %p345 = por %p343, %p344
      %p347 = scmp.ne.s32.totalorder %s330, %s346
      %p348 = scmp.eq.s32.totalorder %s28, 0
      %p349 = por %p347, %p348
      %p350 = scmp.le.s32.totalorder 1, %s22
      %p351 = scmp.lt.s32.totalorder %s22, 5
      %p352 = pnand %p350, %p351
      %p353 = pneg %p352
      // Predicated region
      $region9: #{tpu_custom_call.1} parent=5 // pred_check
        _
      $region10: #{tpu_custom_call.1} parent=5 // pred_check_branch
        %355 = sbr.rel (%p352) target = $region12
      $region11: #{tpu_custom_call.1} parent=5 // pred_region
        %s356 = ssub.s32 %s22, 1
        // Predicated region
        $region13: #{tpu_custom_call.1} parent=11 // pred_check
          %p357 = pneg %p83
        $region14: #{tpu_custom_call.1} parent=11 // pred_check_branch
          %359 = sbr.rel (%p357) target = $region16
        $region15: #{tpu_custom_call.1} parent=11 // pred_region
          _
        $region16: #{tpu_custom_call.1} parent=11 // pred_fallthru
          _
        // Predicated region
        $region17: #{tpu_custom_call.1} parent=11 // pred_check
          %p360 = pneg %p104
        $region18: #{tpu_custom_call.1} parent=11 // pred_check_branch
          %362 = sbr.rel (%p360) target = $region20
        $region19: #{tpu_custom_call.1} parent=11 // pred_region
          _
        $region20: #{tpu_custom_call.1} parent=11 // pred_fallthru
          _
        // Predicated region
        $region21: #{tpu_custom_call.1} parent=11 // pred_check
          %p363 = pneg %p125
        $region22: #{tpu_custom_call.1} parent=11 // pred_check_branch
          %365 = sbr.rel (%p363) target = $region24
        $region23: #{tpu_custom_call.1} parent=11 // pred_region
          _
        $region24: #{tpu_custom_call.1} parent=11 // pred_fallthru
          _
        // Predicated region
        $region25: #{tpu_custom_call.1} parent=11 // pred_check
          %p366 = pneg %p146
        $region26: #{tpu_custom_call.1} parent=11 // pred_check_branch
          %368 = sbr.rel (%p366) target = $region28
        $region27: #{tpu_custom_call.1} parent=11 // pred_region
          _
        $region28: #{tpu_custom_call.1} parent=11 // pred_fallthru
          _
        // Predicated region
        $region29: #{tpu_custom_call.1} parent=11 // pred_check
          %p369 = pneg %p167
        $region30: #{tpu_custom_call.1} parent=11 // pred_check_branch
          %371 = sbr.rel (%p369) target = $region32
        $region31: #{tpu_custom_call.1} parent=11 // pred_region
          _
        $region32: #{tpu_custom_call.1} parent=11 // pred_fallthru
          _
        // Predicated region
        $region33: #{tpu_custom_call.1} parent=11 // pred_check
          %p372 = pneg %p188
        $region34: #{tpu_custom_call.1} parent=11 // pred_check_branch
          %374 = sbr.rel (%p372) target = $region36
        $region35: #{tpu_custom_call.1} parent=11 // pred_region
          _
        $region36: #{tpu_custom_call.1} parent=11 // pred_fallthru
          _
        // Predicated region
        $region37: #{tpu_custom_call.1} parent=11 // pred_check
          %p375 = pneg %p209
        $region38: #{tpu_custom_call.1} parent=11 // pred_check_branch
          %377 = sbr.rel (%p375) target = $region40
        $region39: #{tpu_custom_call.1} parent=11 // pred_region
          _
        $region40: #{tpu_custom_call.1} parent=11 // pred_fallthru
          _
        // Predicated region
        $region41: #{tpu_custom_call.1} parent=11 // pred_check
          %p378 = pneg %p230
        $region42: #{tpu_custom_call.1} parent=11 // pred_check_branch
          %380 = sbr.rel (%p378) target = $region44
        $region43: #{tpu_custom_call.1} parent=11 // pred_region
          _
        $region44: #{tpu_custom_call.1} parent=11 // pred_fallthru
          _
        // Predicated region
        $region45: #{tpu_custom_call.1} parent=11 // pred_check
          %p381 = pneg %p251
        $region46: #{tpu_custom_call.1} parent=11 // pred_check_branch
          %383 = sbr.rel (%p381) target = $region48
        $region47: #{tpu_custom_call.1} parent=11 // pred_region
          _
        $region48: #{tpu_custom_call.1} parent=11 // pred_fallthru
          _
        // Predicated region
        $region49: #{tpu_custom_call.1} parent=11 // pred_check
          %p384 = pneg %p272
        $region50: #{tpu_custom_call.1} parent=11 // pred_check_branch
          %386 = sbr.rel (%p384) target = $region52
        $region51: #{tpu_custom_call.1} parent=11 // pred_region
          _
        $region52: #{tpu_custom_call.1} parent=11 // pred_fallthru
          _
        // Predicated region
        $region53: #{tpu_custom_call.1} parent=11 // pred_check
          %p387 = pneg %p293
        $region54: #{tpu_custom_call.1} parent=11 // pred_check_branch
          %389 = sbr.rel (%p387) target = $region56
        $region55: #{tpu_custom_call.1} parent=11 // pred_region
          _
        $region56: #{tpu_custom_call.1} parent=11 // pred_fallthru
          _
        // Predicated region
        $region57: #{tpu_custom_call.1} parent=11 // pred_check
          %p390 = pneg %p314
        $region58: #{tpu_custom_call.1} parent=11 // pred_check_branch
          %392 = sbr.rel (%p390) target = $region60
        $region59: #{tpu_custom_call.1} parent=11 // pred_region
          _
        $region60: #{tpu_custom_call.1} parent=11 // pred_fallthru
          _
      $region12: #{tpu_custom_call.1} parent=5 // pred_fallthru
        _
      %p393 = scmp.lt.s32.totalorder %s22, 4
      // Predicated region
      $region61: #{tpu_custom_call.1} parent=5 // pred_check
        %p394 = pneg %p393
      $region62: #{tpu_custom_call.1} parent=5 // pred_check_branch
        %396 = sbr.rel (%p394) target = $region64
      $region63: #{tpu_custom_call.1} parent=5 // pred_region
        // Predicated region
        $region65: #{tpu_custom_call.1} parent=63 // pred_check
          %p397 = pneg %p56
        $region66: #{tpu_custom_call.1} parent=63 // pred_check_branch
          %399 = sbr.rel (%p397) target = $region68
        $region67: #{tpu_custom_call.1} parent=63 // pred_region
          %p400 = scmp.lt.s32.totalorder %s29, 1
          %s401 = scalar_select %p400, %s29, 1
          %p402 = scmp.lt.s32.totalorder %s30, 1
          %s403 = scalar_select %p402, %s30, 1
          %s404 = smul.addr %s401, 2
          %s405 = sadd.s32 %s403, %s404
          %s406 = smul.addr %s405, 4
          %s407 = scalar_lea.vmem %s0, %s406
        $region68: #{tpu_custom_call.1} parent=63 // pred_fallthru
          _
      $region64: #{tpu_custom_call.1} parent=5 // pred_fallthru
        _
      %p408 = scmp.le.s32.totalorder 1, %s22
      %p409 = scmp.lt.s32.totalorder %s22, 5
      %p410 = pnand %p408, %p409
      %p411 = pneg %p410
      // Predicated region
      $region69: #{tpu_custom_call.1} parent=5 // pred_check
        _
      $region70: #{tpu_custom_call.1} parent=5 // pred_check_branch
        %413 = sbr.rel (%p410) target = $region72
      $region71: #{tpu_custom_call.1} parent=5 // pred_region
        %s414 = ssub.s32 %s22, 1
        %p415 = scmp.lt.s32.totalorder %s31, 1
        %s416 = scalar_select %p415, %s31, 1
        %p417 = scmp.lt.s32.totalorder %s32, 1
        %s418 = scalar_select %p417, %s32, 1
        %s419 = smul.addr %s416, 2
        %s420 = sadd.s32 %s418, %s419
        %s421 = smul.addr %s420, 4
        %s422 = scalar_lea.vmem %s0, %s421
        %p423 = pneg %p62
        %p424 = pneg %p59
        %p425 = pneg %p83
        %p426 = pneg %p80
        %p427 = pneg %p104
        %p428 = pneg %p101
        %p429 = pneg %p125
        %p430 = pneg %p122
        %p431 = pneg %p146
        %p432 = pneg %p143
        %p433 = pneg %p167
        %p434 = pneg %p164
        %p435 = pneg %p188
        %p436 = pneg %p185
        %p437 = pneg %p209
        %p438 = pneg %p206
        %p439 = pneg %p230
        %p440 = pneg %p227
        %p441 = pneg %p251
        %p442 = pneg %p248
        %p443 = pneg %p272
        %p444 = pneg %p269
        %p445 = pneg %p293
        %p446 = pneg %p290
        %p447 = pneg %p314
        %p448 = pneg %p311
        %p449 = pneg %p342
        %p450 = pneg %p339
        %s451 = sand.u32 %s329, 1
        %s452 = scalar_lea.sflag [#allocation4], %s451
        %s453 = sand.u32 %s329, 1
        %s454 = smul.addr %s453, 2
        %s455 = scalar_lea.vmem [#allocation3], %s454
        %p456 = scmp.lt.s32.totalorder %s31, 1
        %s457 = scalar_select %p456, %s31, 1
        %p458 = scmp.lt.s32.totalorder %s32, 1
        %s459 = scalar_select %p458, %s32, 1
        %s460 = smul.addr %s457, 2
        %s461 = sadd.s32 %s459, %s460
        %s462 = smul.addr %s461, 4
        %s463 = scalar_lea.vmem %s0, %s462
        %v464 = vld [vmem:[%s463] sm:$0xf]
        %v465 = vld [vmem:[%s1] sm:$0xff]
        %v466 = vld [vmem:[%s1 + $0x8] sm:$0x3]
        %v467 = vld [vmem:[%s2] sm:$0xff]
        %v468 = vld [vmem:[%s2 + $0x8] sm:$0x3]
        %470 = vset.pattern.permute.xlu0 0
        %471 = vperm.xlu0 %470, %v467
        %v472 = vpop.permute.xlu0 %471
        %475 = vset.pattern.permute.xlu0 0
        %476 = vperm.xlu0 %475, %v468
        %v477 = vpop.permute.xlu0 %476
        %vm479 = vcmask 31744
        %v481 = vsel %vm479, %v465, 0
        %v484 = vsel %vm479, %v466, 0
        %vm486 = vcmask 1043456
        %v488 = vsel %vm486, %v464, 0
        %490 = vmatprep.subr.mxu0 0.0
        %491 = vmatpush1.msra.mxu0 %v488
        %492 = vmatprep.subr.mxu0 0.0
        %493 = vmatpush1.msra.mxu0 0.0
        %494 = vmatprep.subr.mxu0 0.0
        %495 = vmatpush1.msra.mxu0 0.0
        %496 = vmatprep.subr.mxu0 0.0
        %497 = vmatpush1.msra.mxu0 0.0
        %498 = vmatprep.subr.mxu0 0.0
        %499 = vmatpush1.msra.mxu0 0.0
        %500 = vmatprep.subr.mxu0 0.0
        %501 = vmatpush1.msra.mxu0 0.0
        %502 = vmatprep.subr.mxu0 0.0
        %503 = vmatpush1.msra.mxu0 0.0
        %504 = vmatprep.subr.mxu0 0.0
        %505 = vmatpush1.msra.mxu0 0.0
        %506 = vmatprep.subr.mxu0 0.0
        %507 = vmatpush1.msra.mxu0 0.0
        %508 = vmatprep.subr.mxu0 0.0
        %509 = vmatpush1.msra.mxu0 0.0
        %510 = vmatprep.subr.mxu0 0.0
        %511 = vmatpush1.msra.mxu0 0.0
        %512 = vmatprep.subr.mxu0 0.0
        %513 = vmatpush1.msra.mxu0 0.0
        %514 = vmatprep.subr.mxu0 0.0
        %515 = vmatpush1.msra.mxu0 0.0
        %516 = vmatprep.subr.mxu0 0.0
        %517 = vmatpush1.msra.mxu0 0.0
        %518 = vmatprep.subr.mxu0 0.0
        %519 = vmatpush1.msra.mxu0 0.0
        %520 = vmatprep.subr.mxu0 0.0
        %521 = vmatpush1.msra.mxu0 0.0
        %522 = vmatprep.subr.mxu0 0.0
        %523 = vmatpush1.msra.mxu0 0.0
        %524 = vmatprep.subr.mxu0 0.0
        %525 = vmatpush1.msra.mxu0 0.0
        %526 = vmatprep.subr.mxu0 0.0
        %527 = vmatpush1.msra.mxu0 0.0
        %528 = vmatprep.subr.mxu0 0.0
        %529 = vmatpush1.msra.mxu0 0.0
        %530 = vmatprep.subr.mxu0 0.0
        %531 = vmatpush1.msra.mxu0 0.0
        %532 = vmatprep.subr.mxu0 0.0
        %533 = vmatpush1.msra.mxu0 0.0
        %534 = vmatprep.subr.mxu0 0.0
        %535 = vmatpush1.msra.mxu0 0.0
        %536 = vmatprep.subr.mxu0 0.0
        %537 = vmatpush1.msra.mxu0 0.0
        %538 = vmatprep.subr.mxu0 0.0
        %539 = vmatpush1.msra.mxu0 0.0
        %540 = vmatprep.subr.mxu0 0.0
        %541 = vmatpush1.msra.mxu0 0.0
        %542 = vmatprep.subr.mxu0 0.0
        %543 = vmatpush1.msra.mxu0 0.0
        %544 = vmatprep.subr.mxu0 0.0
        %545 = vmatpush1.msra.mxu0 0.0
        %546 = vmatprep.subr.mxu0 0.0
        %547 = vmatpush1.msra.mxu0 0.0
        %548 = vmatprep.subr.mxu0 0.0
        %549 = vmatpush1.msra.mxu0 0.0
        %550 = vmatprep.subr.mxu0 0.0
        %551 = vmatpush1.msra.mxu0 0.0
        %552 = vmatprep.subr.mxu0 0.0
        %553 = vmatpush1.msra.mxu0 0.0
        %554 = vmatprep.mubr.f32.mxu0 0.0
        %555 = vmatmul.mubr.f32.gmra.mrb[0].mxu0 %v481
        %v556 = vpop.f32.mrb[0].mxu0
        %v557 = vadd.f32 %v472, %v556
        %v558 = vpop.f32.mrb[0].mxu0
        %559 = vmatprep.mubr.f32.mxu0 0.0
        %560 = vmatmul.mubr.f32.gmra.mrb[0].mxu0 %v484
        %v561 = vpop.f32.mrb[0].mxu0
        %v562 = vadd.f32 %v477, %v561
        %v563 = vpop.f32.mrb[0].mxu0
        %564 = vdwg.mxu0
        %v565 = vmax.f32 %v557, 0.0
        %v566 = vmax.f32 %v562, 0.0
        %v567 = vld [vmem:[%s3] sm:$0xff]
        %v568 = vld [vmem:[%s3 + $0x8] sm:$0xff]
        %v569 = vld [vmem:[%s3 + $0x10] sm:$0xff]
        %v570 = vld [vmem:[%s3 + $0x18] sm:$0xff]
        %v571 = vld [vmem:[%s3 + $0x20] sm:$0xff]
        %v572 = vld [vmem:[%s3 + $0x28] sm:$0xff]
        %v573 = vld [vmem:[%s3 + $0x30] sm:$0xff]
        %v574 = vld [vmem:[%s3 + $0x38] sm:$0xff]
        %v575 = vld [vmem:[%s4] sm:$0xff]
        %v576 = vld [vmem:[%s4 + $0x8] sm:$0xff]
        %v577 = vld [vmem:[%s4 + $0x10] sm:$0xff]
        %v578 = vld [vmem:[%s4 + $0x18] sm:$0xff]
        %v579 = vld [vmem:[%s4 + $0x20] sm:$0xff]
        %v580 = vld [vmem:[%s4 + $0x28] sm:$0xff]
        %v581 = vld [vmem:[%s4 + $0x30] sm:$0xff]
        %v582 = vld [vmem:[%s4 + $0x38] sm:$0xff]
        %584 = vset.pattern.permute.xlu0 0
        %585 = vperm.xlu0 %584, %v575
        %v586 = vpop.permute.xlu0 %585
        %589 = vset.pattern.permute.xlu0 0
        %590 = vperm.xlu0 %589, %v576
        %v591 = vpop.permute.xlu0 %590
        %594 = vset.pattern.permute.xlu0 0
        %595 = vperm.xlu0 %594, %v577
        %v596 = vpop.permute.xlu0 %595
        %599 = vset.pattern.permute.xlu0 0
        %600 = vperm.xlu0 %599, %v578
        %v601 = vpop.permute.xlu0 %600
        %604 = vset.pattern.permute.xlu0 0
        %605 = vperm.xlu0 %604, %v579
        %v606 = vpop.permute.xlu0 %605
        %609 = vset.pattern.permute.xlu0 0
        %610 = vperm.xlu0 %609, %v580
        %v611 = vpop.permute.xlu0 %610
        %614 = vset.pattern.permute.xlu0 0
        %615 = vperm.xlu0 %614, %v581
        %v616 = vpop.permute.xlu0 %615
        %619 = vset.pattern.permute.xlu0 0
        %620 = vperm.xlu0 %619, %v582
        %v621 = vpop.permute.xlu0 %620
        %vm623 = vcmask 80896
        %v625 = vsel %vm623, %v567, 0
        %v628 = vsel %vm623, %v568, 0
        %v631 = vsel %vm623, %v569, 0
        %v634 = vsel %vm623, %v570, 0
        %v637 = vsel %vm623, %v571, 0
        %v640 = vsel %vm623, %v572, 0
        %v643 = vsel %vm623, %v573, 0
        %v646 = vsel %vm623, %v574, 0
        %vm648 = vcmask 1041408
        %v650 = vsel %vm648, %v566, 0
        %652 = vmatprep.subr.mxu0 0.0
        %653 = vmatpush1.msra.mxu0 %v565
        %654 = vmatprep.subr.mxu0 0.0
        %655 = vmatpush1.msra.mxu0 %v650
        %656 = vmatprep.subr.mxu0 0.0
        %657 = vmatpush1.msra.mxu0 0.0
        %658 = vmatprep.subr.mxu0 0.0
        %659 = vmatpush1.msra.mxu0 0.0
        %660 = vmatprep.subr.mxu0 0.0
        %661 = vmatpush1.msra.mxu0 0.0
        %662 = vmatprep.subr.mxu0 0.0
        %663 = vmatpush1.msra.mxu0 0.0
        %664 = vmatprep.subr.mxu0 0.0
        %665 = vmatpush1.msra.mxu0 0.0
        %666 = vmatprep.subr.mxu0 0.0
        %667 = vmatpush1.msra.mxu0 0.0
        %668 = vmatprep.subr.mxu0 0.0
        %669 = vmatpush1.msra.mxu0 0.0
        %670 = vmatprep.subr.mxu0 0.0
        %671 = vmatpush1.msra.mxu0 0.0
        %672 = vmatprep.subr.mxu0 0.0
        %673 = vmatpush1.msra.mxu0 0.0
        %674 = vmatprep.subr.mxu0 0.0
        %675 = vmatpush1.msra.mxu0 0.0
        %676 = vmatprep.subr.mxu0 0.0
        %677 = vmatpush1.msra.mxu0 0.0
        %678 = vmatprep.subr.mxu0 0.0
        %679 = vmatpush1.msra.mxu0 0.0
        %680 = vmatprep.subr.mxu0 0.0
        %681 = vmatpush1.msra.mxu0 0.0
        %682 = vmatprep.subr.mxu0 0.0
        %683 = vmatpush1.msra.mxu0 0.0
        %684 = vmatprep.subr.mxu0 0.0
        %685 = vmatpush1.msra.mxu0 0.0
        %686 = vmatprep.subr.mxu0 0.0
        %687 = vmatpush1.msra.mxu0 0.0
        %688 = vmatprep.subr.mxu0 0.0
        %689 = vmatpush1.msra.mxu0 0.0
        %690 = vmatprep.subr.mxu0 0.0
        %691 = vmatpush1.msra.mxu0 0.0
        %692 = vmatprep.subr.mxu0 0.0
        %693 = vmatpush1.msra.mxu0 0.0
        %694 = vmatprep.subr.mxu0 0.0
        %695 = vmatpush1.msra.mxu0 0.0
        %696 = vmatprep.subr.mxu0 0.0
        %697 = vmatpush1.msra.mxu0 0.0
        %698 = vmatprep.subr.mxu0 0.0
        %699 = vmatpush1.msra.mxu0 0.0
        %700 = vmatprep.subr.mxu0 0.0
        %701 = vmatpush1.msra.mxu0 0.0
        %702 = vmatprep.subr.mxu0 0.0
        %703 = vmatpush1.msra.mxu0 0.0
        %704 = vmatprep.subr.mxu0 0.0
        %705 = vmatpush1.msra.mxu0 0.0
        %706 = vmatprep.subr.mxu0 0.0
        %707 = vmatpush1.msra.mxu0 0.0
        %708 = vmatprep.subr.mxu0 0.0
        %709 = vmatpush1.msra.mxu0 0.0
        %710 = vmatprep.subr.mxu0 0.0
        %711 = vmatpush1.msra.mxu0 0.0
        %712 = vmatprep.subr.mxu0 0.0
        %713 = vmatpush1.msra.mxu0 0.0
        %714 = vmatprep.subr.mxu0 0.0
        %715 = vmatpush1.msra.mxu0 0.0
        %716 = vmatprep.mubr.f32.mxu0 0.0
        %717 = vmatmul.mubr.f32.gmra.mrb[0].mxu0 %v625
        %v718 = vpop.f32.mrb[0].mxu0
        %v719 = vadd.f32 %v586, %v718
        %v720 = vpop.f32.mrb[0].mxu0
        %721 = vmatprep.mubr.f32.mxu0 0.0
        %722 = vmatmul.mubr.f32.gmra.mrb[0].mxu0 %v628
        %v723 = vpop.f32.mrb[0].mxu0
        %v724 = vadd.f32 %v591, %v723
        %v725 = vpop.f32.mrb[0].mxu0
        %726 = vmatprep.mubr.f32.mxu0 0.0
        %727 = vmatmul.mubr.f32.gmra.mrb[0].mxu0 %v631
        %v728 = vpop.f32.mrb[0].mxu0
        %v729 = vadd.f32 %v596, %v728
        %v730 = vpop.f32.mrb[0].mxu0
        %731 = vmatprep.mubr.f32.mxu0 0.0
        %732 = vmatmul.mubr.f32.gmra.mrb[0].mxu0 %v634
        %v733 = vpop.f32.mrb[0].mxu0
        %v734 = vadd.f32 %v601, %v733
        %v735 = vpop.f32.mrb[0].mxu0
        %736 = vmatprep.mubr.f32.mxu0 0.0
        %737 = vmatmul.mubr.f32.gmra.mrb[0].mxu0 %v637
        %v738 = vpop.f32.mrb[0].mxu0
        %v739 = vadd.f32 %v606, %v738
        %v740 = vpop.f32.mrb[0].mxu0
        %741 = vmatprep.mubr.f32.mxu0 0.0
        %742 = vmatmul.mubr.f32.gmra.mrb[0].mxu0 %v640
        %v743 = vpop.f32.mrb[0].mxu0
        %v744 = vadd.f32 %v611, %v743
        %v745 = vpop.f32.mrb[0].mxu0
        %746 = vmatprep.mubr.f32.mxu0 0.0
        %747 = vmatmul.mubr.f32.gmra.mrb[0].mxu0 %v643
        %v748 = vpop.f32.mrb[0].mxu0
        %v749 = vadd.f32 %v616, %v748
        %v750 = vpop.f32.mrb[0].mxu0
        %751 = vmatprep.mubr.f32.mxu0 0.0
        %752 = vmatmul.mubr.f32.gmra.mrb[0].mxu0 %v646
        %v753 = vpop.f32.mrb[0].mxu0
        %v754 = vadd.f32 %v621, %v753
        %v755 = vpop.f32.mrb[0].mxu0
        %756 = vdwg.mxu0
        %v757 = vrcp.pop %v739
        %v758 = vrcp.pop %v744
        %v759 = vrcp.pop %v749
        %v760 = vrcp.pop %v754
        %v761 = vmul.f32 %v719, %v757
        %v762 = vmul.f32 %v724, %v758
        %v763 = vmul.f32 %v729, %v759
        %v764 = vmul.f32 %v734, %v760
        %765 = vst [vmem:[#allocation2] sm:$0xff] %v761
        %766 = vst [vmem:[#allocation2 + $0x8] sm:$0xff] %v762
        %767 = vst [vmem:[#allocation2 + $0x10] sm:$0xff] %v763
        %768 = vst [vmem:[#allocation2 + $0x18] sm:$0xff] %v764
        %769 = vst [vmem:[#allocation2 + $0x20] sm:$0xff] %v565
        %770 = vst [vmem:[#allocation2 + $0x28] sm:$0x3] %v566
        %v771 = vld [vmem:[%s5] sm:$0xff]
        %v772 = vld [vmem:[%s5 + $0x8] sm:$0xff]
        %v773 = vld [vmem:[#allocation2] sm:$0xff]
        %v774 = vld [vmem:[#allocation2 + $0x8] sm:$0xff]
        %v775 = vld [vmem:[#allocation2 + $0x10] sm:$0xff]
        %v776 = vld [vmem:[#allocation2 + $0x18] sm:$0xff]
        %v777 = vld [vmem:[#allocation2 + $0x20] sm:$0xff]
        %v778 = vld [vmem:[#allocation2 + $0x28] sm:$0x3]
        %v779 = vld [vmem:[%s6] sm:$0xff]
        %v780 = vld [vmem:[%s6 + $0x8] sm:$0xff]
        %782 = vset.pattern.permute.xlu0 0
        %783 = vperm.xlu0 %782, %v779
        %v784 = vpop.permute.xlu0 %783
        %787 = vset.pattern.permute.xlu0 0
        %788 = vperm.xlu0 %787, %v780
        %v789 = vpop.permute.xlu0 %788
        %vm791 = vcmask 343040
        %v793 = vsel %vm791, %v771, 0
        %v796 = vsel %vm791, %v772, 0
        %v799 = vsel %vm648, %v778, 0
        %801 = vmatprep.subr.mxu0 0.0
        %802 = vmatpush1.msra.mxu0 %v773
        %803 = vmatprep.subr.mxu0 0.0
        %804 = vmatpush1.msra.mxu0 %v774
        %805 = vmatprep.subr.mxu0 0.0
        %806 = vmatpush1.msra.mxu0 %v775
        %807 = vmatprep.subr.mxu0 0.0
        %808 = vmatpush1.msra.mxu0 %v776
        %809 = vmatprep.subr.mxu0 0.0
        %810 = vmatpush1.msra.mxu0 %v777
        %811 = vmatprep.subr.mxu0 0.0
        %812 = vmatpush1.msra.mxu0 %v799
        %813 = vmatprep.subr.mxu0 0.0
        %814 = vmatpush1.msra.mxu0 0.0
        %815 = vmatprep.subr.mxu0 0.0
        %816 = vmatpush1.msra.mxu0 0.0
        %817 = vmatprep.subr.mxu0 0.0
        %818 = vmatpush1.msra.mxu0 0.0
        %819 = vmatprep.subr.mxu0 0.0
        %820 = vmatpush1.msra.mxu0 0.0
        %821 = vmatprep.subr.mxu0 0.0
        %822 = vmatpush1.msra.mxu0 0.0
        %823 = vmatprep.subr.mxu0 0.0
        %824 = vmatpush1.msra.mxu0 0.0
        %825 = vmatprep.subr.mxu0 0.0
        %826 = vmatpush1.msra.mxu0 0.0
        %827 = vmatprep.subr.mxu0 0.0
        %828 = vmatpush1.msra.mxu0 0.0
        %829 = vmatprep.subr.mxu0 0.0
        %830 = vmatpush1.msra.mxu0 0.0
        %831 = vmatprep.subr.mxu0 0.0
        %832 = vmatpush1.msra.mxu0 0.0
        %833 = vmatprep.subr.mxu0 0.0
        %834 = vmatpush1.msra.mxu0 0.0
        %835 = vmatprep.subr.mxu0 0.0
        %836 = vmatpush1.msra.mxu0 0.0
        %837 = vmatprep.subr.mxu0 0.0
        %838 = vmatpush1.msra.mxu0 0.0
        %839 = vmatprep.subr.mxu0 0.0
        %840 = vmatpush1.msra.mxu0 0.0
        %841 = vmatprep.subr.mxu0 0.0
        %842 = vmatpush1.msra.mxu0 0.0
        %843 = vmatprep.subr.mxu0 0.0
        %844 = vmatpush1.msra.mxu0 0.0
        %845 = vmatprep.subr.mxu0 0.0
        %846 = vmatpush1.msra.mxu0 0.0
        %847 = vmatprep.subr.mxu0 0.0
        %848 = vmatpush1.msra.mxu0 0.0
        %849 = vmatprep.subr.mxu0 0.0
        %850 = vmatpush1.msra.mxu0 0.0
        %851 = vmatprep.subr.mxu0 0.0
        %852 = vmatpush1.msra.mxu0 0.0
        %853 = vmatprep.subr.mxu0 0.0
        %854 = vmatpush1.msra.mxu0 0.0
        %855 = vmatprep.subr.mxu0 0.0
        %856 = vmatpush1.msra.mxu0 0.0
        %857 = vmatprep.subr.mxu0 0.0
        %858 = vmatpush1.msra.mxu0 0.0
        %859 = vmatprep.subr.mxu0 0.0
        %860 = vmatpush1.msra.mxu0 0.0
        %861 = vmatprep.subr.mxu0 0.0
        %862 = vmatpush1.msra.mxu0 0.0
        %863 = vmatprep.subr.mxu0 0.0
        %864 = vmatpush1.msra.mxu0 0.0
        %865 = vmatprep.mubr.f32.mxu0 0.0
        %866 = vmatmul.mubr.f32.gmra.mrb[0].mxu0 %v793
        %v867 = vpop.f32.mrb[0].mxu0
        %v868 = vadd.f32 %v784, %v867
        %v869 = vpop.f32.mrb[0].mxu0
        %870 = vmatprep.mubr.f32.mxu0 0.0
        %871 = vmatmul.mubr.f32.gmra.mrb[0].mxu0 %v796
        %v872 = vpop.f32.mrb[0].mxu0
        %v873 = vadd.f32 %v789, %v872
        %v874 = vpop.f32.mrb[0].mxu0
        %875 = vdwg.mxu0
        %v876 = vmax.f32 %v868, 0.0
        %v877 = vmax.f32 %v873, 0.0
        %v878 = vld [vmem:[%s7] sm:$0xff]
        %v879 = vld [vmem:[%s8] sm:$0xff]
        %881 = vset.pattern.permute.xlu0 0
        %882 = vperm.xlu0 %881, %v879
        %v883 = vpop.permute.xlu0 %882
        %vm885 = vcmask 130048
        %v887 = vsel %vm885, %v878, 0
        %889 = vmatprep.subr.mxu0 0.0
        %890 = vmatpush1.msra.mxu0 %v876
        %891 = vmatprep.subr.mxu0 0.0
        %892 = vmatpush1.msra.mxu0 %v877
        %893 = vmatprep.subr.mxu0 0.0
        %894 = vmatpush1.msra.mxu0 0.0
        %895 = vmatprep.subr.mxu0 0.0
        %896 = vmatpush1.msra.mxu0 0.0
        %897 = vmatprep.subr.mxu0 0.0
        %898 = vmatpush1.msra.mxu0 0.0
        %899 = vmatprep.subr.mxu0 0.0
        %900 = vmatpush1.msra.mxu0 0.0
        %901 = vmatprep.subr.mxu0 0.0
        %902 = vmatpush1.msra.mxu0 0.0
        %903 = vmatprep.subr.mxu0 0.0
        %904 = vmatpush1.msra.mxu0 0.0
        %905 = vmatprep.subr.mxu0 0.0
        %906 = vmatpush1.msra.mxu0 0.0
        %907 = vmatprep.subr.mxu0 0.0
        %908 = vmatpush1.msra.mxu0 0.0
        %909 = vmatprep.subr.mxu0 0.0
        %910 = vmatpush1.msra.mxu0 0.0
        %911 = vmatprep.subr.mxu0 0.0
        %912 = vmatpush1.msra.mxu0 0.0
        %913 = vmatprep.subr.mxu0 0.0
        %914 = vmatpush1.msra.mxu0 0.0
        %915 = vmatprep.subr.mxu0 0.0
        %916 = vmatpush1.msra.mxu0 0.0
        %917 = vmatprep.subr.mxu0 0.0
        %918 = vmatpush1.msra.mxu0 0.0
        %919 = vmatprep.subr.mxu0 0.0
        %920 = vmatpush1.msra.mxu0 0.0
        %921 = vmatprep.subr.mxu0 0.0
        %922 = vmatpush1.msra.mxu0 0.0
        %923 = vmatprep.subr.mxu0 0.0
        %924 = vmatpush1.msra.mxu0 0.0
        %925 = vmatprep.subr.mxu0 0.0
        %926 = vmatpush1.msra.mxu0 0.0
        %927 = vmatprep.subr.mxu0 0.0
        %928 = vmatpush1.msra.mxu0 0.0
        %929 = vmatprep.subr.mxu0 0.0
        %930 = vmatpush1.msra.mxu0 0.0
        %931 = vmatprep.subr.mxu0 0.0
        %932 = vmatpush1.msra.mxu0 0.0
        %933 = vmatprep.subr.mxu0 0.0
        %934 = vmatpush1.msra.mxu0 0.0
        %935 = vmatprep.subr.mxu0 0.0
        %936 = vmatpush1.msra.mxu0 0.0
        %937 = vmatprep.subr.mxu0 0.0
        %938 = vmatpush1.msra.mxu0 0.0
        %939 = vmatprep.subr.mxu0 0.0
        %940 = vmatpush1.msra.mxu0 0.0
        %941 = vmatprep.subr.mxu0 0.0
        %942 = vmatpush1.msra.mxu0 0.0
        %943 = vmatprep.subr.mxu0 0.0
        %944 = vmatpush1.msra.mxu0 0.0
        %945 = vmatprep.subr.mxu0 0.0
        %946 = vmatpush1.msra.mxu0 0.0
        %947 = vmatprep.subr.mxu0 0.0
        %948 = vmatpush1.msra.mxu0 0.0
        %949 = vmatprep.subr.mxu0 0.0
        %950 = vmatpush1.msra.mxu0 0.0
        %951 = vmatprep.subr.mxu0 0.0
        %952 = vmatpush1.msra.mxu0 0.0
        %953 = vmatprep.mubr.f32.mxu0 0.0
        %954 = vmatmul.mubr.f32.gmra.mrb[0].mxu0 %v887
        %v955 = vpop.f32.mrb[0].mxu0
        %v956 = vadd.f32 %v883, %v955
        %v957 = vpop.f32.mrb[0].mxu0
        %958 = vdwg.mxu0
        %v959 = vmax.f32 %v956, 0.0
        %v960 = vld [vmem:[%s9] sm:$0xf]
        %v961 = vld [vmem:[%s10] sm:$0xf]
        %963 = vset.pattern.permute.xlu0 0
        %964 = vperm.xlu0 %963, %v961
        %v965 = vpop.permute.xlu0 %964
        %vm967 = vcmask 64512
        %v969 = vsel %vm967, %v960, 0
        %971 = vmatprep.subr.mxu0 0.0
        %972 = vmatpush1.msra.mxu0 %v959
        %973 = vmatprep.subr.mxu0 0.0
        %974 = vmatpush1.msra.mxu0 0.0
        %975 = vmatprep.subr.mxu0 0.0
        %976 = vmatpush1.msra.mxu0 0.0
        %977 = vmatprep.subr.mxu0 0.0
        %978 = vmatpush1.msra.mxu0 0.0
        %979 = vmatprep.subr.mxu0 0.0
        %980 = vmatpush1.msra.mxu0 0.0
        %981 = vmatprep.subr.mxu0 0.0
        %982 = vmatpush1.msra.mxu0 0.0
        %983 = vmatprep.subr.mxu0 0.0
        %984 = vmatpush1.msra.mxu0 0.0
        %985 = vmatprep.subr.mxu0 0.0
        %986 = vmatpush1.msra.mxu0 0.0
        %987 = vmatprep.subr.mxu0 0.0
        %988 = vmatpush1.msra.mxu0 0.0
        %989 = vmatprep.subr.mxu0 0.0
        %990 = vmatpush1.msra.mxu0 0.0
        %991 = vmatprep.subr.mxu0 0.0
        %992 = vmatpush1.msra.mxu0 0.0
        %993 = vmatprep.subr.mxu0 0.0
        %994 = vmatpush1.msra.mxu0 0.0
        %995 = vmatprep.subr.mxu0 0.0
        %996 = vmatpush1.msra.mxu0 0.0
        %997 = vmatprep.subr.mxu0 0.0
        %998 = vmatpush1.msra.mxu0 0.0
        %999 = vmatprep.subr.mxu0 0.0
        %1000 = vmatpush1.msra.mxu0 0.0
        %1001 = vmatprep.subr.mxu0 0.0
        %1002 = vmatpush1.msra.mxu0 0.0
        %1003 = vmatprep.subr.mxu0 0.0
        %1004 = vmatpush1.msra.mxu0 0.0
        %1005 = vmatprep.subr.mxu0 0.0
        %1006 = vmatpush1.msra.mxu0 0.0
        %1007 = vmatprep.subr.mxu0 0.0
        %1008 = vmatpush1.msra.mxu0 0.0
        %1009 = vmatprep.subr.mxu0 0.0
        %1010 = vmatpush1.msra.mxu0 0.0
        %1011 = vmatprep.subr.mxu0 0.0
        %1012 = vmatpush1.msra.mxu0 0.0
        %1013 = vmatprep.subr.mxu0 0.0
        %1014 = vmatpush1.msra.mxu0 0.0
        %1015 = vmatprep.subr.mxu0 0.0
        %1016 = vmatpush1.msra.mxu0 0.0
        %1017 = vmatprep.subr.mxu0 0.0
        %1018 = vmatpush1.msra.mxu0 0.0
        %1019 = vmatprep.subr.mxu0 0.0
        %1020 = vmatpush1.msra.mxu0 0.0
        %1021 = vmatprep.subr.mxu0 0.0
        %1022 = vmatpush1.msra.mxu0 0.0
        %1023 = vmatprep.subr.mxu0 0.0
        %1024 = vmatpush1.msra.mxu0 0.0
        %1025 = vmatprep.subr.mxu0 0.0
        %1026 = vmatpush1.msra.mxu0 0.0
        %1027 = vmatprep.subr.mxu0 0.0
        %1028 = vmatpush1.msra.mxu0 0.0
        %1029 = vmatprep.subr.mxu0 0.0
        %1030 = vmatpush1.msra.mxu0 0.0
        %1031 = vmatprep.subr.mxu0 0.0
        %1032 = vmatpush1.msra.mxu0 0.0
        %1033 = vmatprep.subr.mxu0 0.0
        %1034 = vmatpush1.msra.mxu0 0.0
        %1035 = vmatprep.mubr.f32.mxu0 0.0
        %1036 = vmatmul.mubr.f32.gmra.mrb[0].mxu0 %v969
        %v1037 = vpop.f32.mrb[0].mxu0
        %v1038 = vadd.f32 %v965, %v1037
        %v1039 = vpop.f32.mrb[0].mxu0
        %1040 = vdwg.mxu0
        %v1041 = vmax.f32 %v1038, 0.0
        %v1042 = vld [vmem:[%s11] sm:$0x3]
        %v1043 = vld [vmem:[%s12] sm:$0x3]
        %1045 = vset.pattern.permute.xlu0 0
        %1046 = vperm.xlu0 %1045, %v1043
        %v1047 = vpop.permute.xlu0 %1046
        %v1050 = vsel %vm479, %v1042, 0
        %v1053 = vsel %vm486, %v1041, 0
        %1055 = vmatprep.subr.mxu0 0.0
        %1056 = vmatpush1.msra.mxu0 %v1053
        %1057 = vmatprep.subr.mxu0 0.0
        %1058 = vmatpush1.msra.mxu0 0.0
        %1059 = vmatprep.subr.mxu0 0.0
        %1060 = vmatpush1.msra.mxu0 0.0
        %1061 = vmatprep.subr.mxu0 0.0
        %1062 = vmatpush1.msra.mxu0 0.0
        %1063 = vmatprep.subr.mxu0 0.0
        %1064 = vmatpush1.msra.mxu0 0.0
        %1065 = vmatprep.subr.mxu0 0.0
        %1066 = vmatpush1.msra.mxu0 0.0
        %1067 = vmatprep.subr.mxu0 0.0
        %1068 = vmatpush1.msra.mxu0 0.0
        %1069 = vmatprep.subr.mxu0 0.0
        %1070 = vmatpush1.msra.mxu0 0.0
        %1071 = vmatprep.subr.mxu0 0.0
        %1072 = vmatpush1.msra.mxu0 0.0
        %1073 = vmatprep.subr.mxu0 0.0
        %1074 = vmatpush1.msra.mxu0 0.0
        %1075 = vmatprep.subr.mxu0 0.0
        %1076 = vmatpush1.msra.mxu0 0.0
        %1077 = vmatprep.subr.mxu0 0.0
        %1078 = vmatpush1.msra.mxu0 0.0
        %1079 = vmatprep.subr.mxu0 0.0
        %1080 = vmatpush1.msra.mxu0 0.0
        %1081 = vmatprep.subr.mxu0 0.0
        %1082 = vmatpush1.msra.mxu0 0.0
        %1083 = vmatprep.subr.mxu0 0.0
        %1084 = vmatpush1.msra.mxu0 0.0
        %1085 = vmatprep.subr.mxu0 0.0
        %1086 = vmatpush1.msra.mxu0 0.0
        %1087 = vmatprep.subr.mxu0 0.0
        %1088 = vmatpush1.msra.mxu0 0.0
        %1089 = vmatprep.subr.mxu0 0.0
        %1090 = vmatpush1.msra.mxu0 0.0
        %1091 = vmatprep.subr.mxu0 0.0
        %1092 = vmatpush1.msra.mxu0 0.0
        %1093 = vmatprep.subr.mxu0 0.0
        %1094 = vmatpush1.msra.mxu0 0.0
        %1095 = vmatprep.subr.mxu0 0.0
        %1096 = vmatpush1.msra.mxu0 0.0
        %1097 = vmatprep.subr.mxu0 0.0
        %1098 = vmatpush1.msra.mxu0 0.0
        %1099 = vmatprep.subr.mxu0 0.0
        %1100 = vmatpush1.msra.mxu0 0.0
        %1101 = vmatprep.subr.mxu0 0.0
        %1102 = vmatpush1.msra.mxu0 0.0
        %1103 = vmatprep.subr.mxu0 0.0
        %1104 = vmatpush1.msra.mxu0 0.0
        %1105 = vmatprep.subr.mxu0 0.0
        %1106 = vmatpush1.msra.mxu0 0.0
        %1107 = vmatprep.subr.mxu0 0.0
        %1108 = vmatpush1.msra.mxu0 0.0
        %1109 = vmatprep.subr.mxu0 0.0
        %1110 = vmatpush1.msra.mxu0 0.0
        %1111 = vmatprep.subr.mxu0 0.0
        %1112 = vmatpush1.msra.mxu0 0.0
        %1113 = vmatprep.subr.mxu0 0.0
        %1114 = vmatpush1.msra.mxu0 0.0
        %1115 = vmatprep.subr.mxu0 0.0
        %1116 = vmatpush1.msra.mxu0 0.0
        %1117 = vmatprep.subr.mxu0 0.0
        %1118 = vmatpush1.msra.mxu0 0.0
        %1119 = vmatprep.mubr.f32.mxu0 0.0
        %1120 = vmatmul.mubr.f32.gmra.mrb[0].mxu0 %v1050
        %v1121 = vpop.f32.mrb[0].mxu0
        %v1122 = vadd.f32 %v1047, %v1121
        %v1123 = vpop.f32.mrb[0].mxu0
        %1124 = vdwg.mxu0
        %1125 = vst [vmem:[%s455] sm:$0x3] %v1122
        %s1126 = sand.u32 %s329, 1
        %s1127 = scalar_lea.sflag [#allocation4], %s1126
        %s1128 = sand.u32 %s329, 1
        %s1129 = smul.addr %s1128, 2
        %s1130 = scalar_lea.vmem [#allocation3], %s1129
        // Predicated region
        $region73: #{tpu_custom_call.1} parent=71 // pred_check
          %p1131 = pneg %p339
        $region74: #{tpu_custom_call.1} parent=71 // pred_check_branch
          %1133 = sbr.rel (%p1131) target = $region76
        $region75: #{tpu_custom_call.1} parent=71 // pred_region
          %s1135 = ssub.s32 32, 32
          %1136 = vsyncadd %s1127, %s1135
          %s1137 = smul.addr %s31, 2
          %s1138 = sadd.s32 %s32, %s1137
          %s1139 = smul.addr %s1138, 32
          %s1140 = scalar_lea.hbm %s13, %s1139
          %s1142 = sshll.u32 %s1130, 4
          %s1143 = int_to_ptr.vmem [resolvable:$true] %s1142
          %1145 = dma.vmem_to_hbm [thread:$0]  %s1143, 32, %s1140, %s1127
        $region76: #{tpu_custom_call.1} parent=71 // pred_fallthru
          _
      $region72: #{tpu_custom_call.1} parent=5 // pred_fallthru
        _
      %p1146 = scmp.le.s32.totalorder 2, %s22
      // Predicated region
      $region77: #{tpu_custom_call.1} parent=5 // pred_check
        %p1147 = pneg %p1146
      $region78: #{tpu_custom_call.1} parent=5 // pred_check_branch
        %1149 = sbr.rel (%p1147) target = $region80
      $region79: #{tpu_custom_call.1} parent=5 // pred_region
        %s1150 = ssub.s32 %s22, 2
        // Predicated region
        $region81: #{tpu_custom_call.1} parent=79 // pred_check
          %p1151 = pneg %p345
        $region82: #{tpu_custom_call.1} parent=79 // pred_check_branch
          %1153 = sbr.rel (%p1151) target = $region84
        $region83: #{tpu_custom_call.1} parent=79 // pred_region
          %s1154 = sand.u32 %s330, 1
          %s1155 = scalar_lea.sflag [#allocation4], %s1154
          %s1156 = sand.u32 %s330, 1
          %s1157 = smul.addr %s1156, 2
          %s1158 = scalar_lea.vmem [#allocation3], %s1157
          %1159 = dma.done %s1155, 32
        $region84: #{tpu_custom_call.1} parent=79 // pred_fallthru
          _
      $region80: #{tpu_custom_call.1} parent=5 // pred_fallthru
        _
    $region6: #{tpu_custom_call.1} parent=1 // loop_footer
      %s26 = sadd.s32 1, %s22
    $region7: #{tpu_custom_call.1} parent=1 // loop_footer_branch
      %21 = sbr.rel target = $region3
    $region8: #{tpu_custom_call.1} parent=1 // loop_exit
      _
    %1160 = vsyncpa [#allocation4], 1
    %s1161 = scalar_lea.sflag [#allocation4], 1
    %1162 = vsyncpa %s1161, 1

</llo_original>
